<compile_context>
chip_gen: v7x
topology: tpu7x:2x2x1
jax: 0.10.0
libtpu: 0.0.40
codegen_flags: <defaults>
</compile_context>

<pallas_src>
import numpy as np

import jax
import jax.numpy as jnp
from jax.experimental import pallas as pl
from jax.experimental.pallas import tpu as pltpu

# ---- problem sizes (consistent with the module) ----------------------------
B = 2            # batch
C = 8            # in_channels (GroupNorm n_groups=8 requires C % 8 == 0)
N_GROUPS = 8     # GroupNorm groups
H = W = 16       # spatial
OC = 1           # out_channels  (OC * H * W must equal 256)
HW = H * W
FEAT = OC * HW   # = 256, input width of the FL head
EPS = 1e-5

assert FEAT == 256, "Linear(256, 256) requires out_channels * H * W == 256"


def _build_conv_masks():
    """(9, HW) 0/1 masks: mask[t, y*W+x] == 1 iff source pixel of tap t is in-image."""
    ys, xs = np.meshgrid(np.arange(H), np.arange(W), indexing="ij")
    masks = np.zeros((9, HW), np.float32)
    for ky in range(3):
        for kx in range(3):
            dy, dx = ky - 1, kx - 1
            valid = ((ys + dy >= 0) & (ys + dy <= H - 1) &
                     (xs + dx >= 0) & (xs + dx <= W - 1))
            masks[ky * 3 + kx] = valid.reshape(-1).astype(np.float32)
    return masks


CONV_MASKS = jnp.asarray(_build_conv_masks())          # (9, HW) f32, static


# ---------------------------------------------------------------------------
# One fused kernel: GroupNorm + ReLU + 3x3 conv + flatten + MLP head.
#
# Packed parameter layout:
#   lane_ref : (11, 256) f32  rows 0..8 = boundary masks, 9 = b1, 10 = w2^T
#   sub_ref  : (88, 1)   f32  rows 0..7 = gamma, 8..15 = beta,
#                              16..87 = conv taps, tap-major / channel-minor
#   scal_ref : (2,) f32 in SMEM: [conv bias, final bias]
# ---------------------------------------------------------------------------
def confidence_kernel(x_ref, w1_ref, lane_ref, sub_ref, scal_ref, o_ref):
    # ---------------- GroupNorm (centered variance) + ReLU ------------------
    x = x_ref[...]                                          # (B, C, HW) f32
    cpg = C // N_GROUPS
    xg = x.reshape(B, N_GROUPS, cpg * HW)
    mean = jnp.mean(xg, axis=-1, keepdims=True)
    cen = xg - mean
    var = jnp.mean(cen * cen, axis=-1, keepdims=True)       # centered (biased) form
    xn = (cen * jax.lax.rsqrt(var + EPS)).reshape(B, C, HW)
    gamma = sub_ref[0:C, :]                                  # (C, 1)
    beta = sub_ref[C:2 * C, :]                               # (C, 1)
    g = jnp.maximum(xn * gamma + beta, 0.0)                  # (B, C, HW)

    # -------- 3x3 conv, padding=1: 9 masked lane rolls on XLU + VPU MAC -----
    # Boundary masks are precomputed constants folded into the tap weights:
    # per tap only roll + mul + add remain on the critical (VALU) path.
    g2 = g.reshape(B * C, HW)                                # (B*C, HW)
    acc = jnp.zeros((B, C, HW), jnp.float32)
    for ky in range(3):
        for kx in range(3):
            t = ky * 3 + kx
            s = (ky - 1) * W + (kx - 1)                      # flat source offset
            # tap[i] = g2[:, i + s]; wraparound positions are zeroed by the mask
            tap2 = g2 if s == 0 else pltpu.roll(g2, shift=(-s) % HW, axis=1)
            wt = sub_ref[2 * C + t * C: 2 * C + (t + 1) * C, :]   # (C, 1) per-channel
            m = lane_ref[t:t + 1, :]                              # (1, HW) mask
            acc = acc + tap2.reshape(B, C, HW) * (wt * m)         # bcast over batch
    # sum over input channels + conv bias -> flattened conv output (B, 256)
    v = jnp.sum(acc, axis=1) + scal_ref[0]

    # -------- FL head: Linear(256,256) -> ReLU -> Linear(256,1) -------------
    # bf16 operands, f32 accumulation: single-pass MXU matmul, half the w1 DMA.
    h = jnp.dot(v.astype(jnp.bfloat16), w1_ref[...],
                preferred_element_type=jnp.float32)          # (B, 256) f32
    h = jnp.maximum(h + lane_ref[9:10, :], 0.0)              # + b1, ReLU
    # Final 256 -> 1 projection: VPU multiply + lane reduce (avoid N=1 matmul).
    o_ref[...] = (jnp.sum(h * lane_ref[10:11, :], axis=-1, keepdims=True)
                  + scal_ref[1])


def confidence_pallas(x3, w1b, lane_pack, sub_pack, scal):
    vmem = lambda: pl.BlockSpec(memory_space=pltpu.MemorySpace.VMEM)
    smem = lambda: pl.BlockSpec(memory_space=pltpu.MemorySpace.SMEM)
    return pl.pallas_call(
        confidence_kernel,
        out_shape=jax.ShapeDtypeStruct((B, 1), jnp.float32),
        in_specs=[vmem(), vmem(), vmem(), vmem(), smem()],
        out_specs=vmem(),
    )(x3, w1b, lane_pack, sub_pack, scal)


@jax.jit
def confidence_forward(x, params):
    gamma, beta, wconv, bconv, w1, b1, w2, b2 = params
    x3 = x.reshape(B, C, HW)                                 # free metadata reshape

    # Per-tap per-channel conv weights: w9c[t, c] = wconv[0, c, ky*3+kx]
    w9c = wconv.reshape(OC, C, 9)[0].T                       # (9, C)

    # Packed small parameters: 2 VMEM buffers + 1 SMEM scalar pair.
    sub_pack = jnp.concatenate(
        [gamma.reshape(C, 1), beta.reshape(C, 1), w9c.reshape(9 * C, 1)],
        axis=0)                                              # (88, 1)
    lane_pack = jnp.concatenate(
        [CONV_MASKS, b1.reshape(1, FEAT), w2.reshape(1, FEAT)],
        axis=0)                                              # (11, 256)
    scal = jnp.concatenate([bconv.reshape(1), b2.reshape(1)])  # (2,) SMEM scalars

    return confidence_pallas(
        x3,
        w1.astype(jnp.bfloat16),                             # (256, 256) bf16
        lane_pack,
        sub_pack,
        scal,
    )                                                         # (B, 1)


# ---------------------------------------------------------------------------
# Pure-JAX reference (for a correctness check).
# ---------------------------------------------------------------------------
def reference(x, params):
    gamma, beta, wconv, bconv, w1, b1, w2, b2 = params
    xg = x.reshape(B, N_GROUPS, -1)
    mean = xg.mean(-1, keepdims=True)
    var = ((xg - mean) ** 2).mean(-1, keepdims=True)
    xn = (xg - mean) / jnp.sqrt(var + EPS)
    xn = xn.reshape(B, C, H, W) * gamma[None, :, None, None] \
         + beta[None, :, None, None]
    xr = jnp.maximum(xn, 0.0)
    y = jax.lax.conv_general_dilated(
        xr, wconv, (1, 1), "SAME",
        dimension_numbers=("NCHW", "OIHW", "NCHW")) \
        + bconv[None, :, None, None]
    v = y.reshape(B, -1)
    h = jnp.maximum(v @ w1 + b1, 0.0)
    return h @ w2 + b2


# ---------------------------------------------------------------------------
if __name__ == "__main__":
    key = jax.random.PRNGKey(0)
    kx, kc, kcb, k1, k1b, k2, k2b = jax.random.split(key, 7)

    x = jax.random.normal(kx, (B, C, H, W), jnp.float32)

    # Deterministic synthetic parameters (shapes per the module __init__).
    gamma = jnp.ones((C,), jnp.float32)                  # GroupNorm weight
    beta = jnp.zeros((C,), jnp.float32)                  # GroupNorm bias
    wconv = 0.1 * jax.random.normal(kc, (OC, C, 3, 3), jnp.float32)
    bconv = 0.1 * jax.random.normal(kcb, (OC,), jnp.float32)
    w1 = 0.05 * jax.random.normal(k1, (FEAT, FEAT), jnp.float32)
    b1 = 0.05 * jax.random.normal(k1b, (FEAT,), jnp.float32)
    w2 = 0.05 * jax.random.normal(k2, (FEAT, 1), jnp.float32)
    b2 = 0.05 * jax.random.normal(k2b, (1,), jnp.float32)

    params = (gamma, beta, wconv, bconv, w1, b1, w2, b2)

    out = confidence_forward(x, params)
    out = jax.block_until_ready(out)

    ref = reference(x, params)
    assert out.shape == (B, 1), out.shape
    # Tolerance covers the intentional bf16 cast of the FL-head matmul operands.
    assert jnp.allclose(out, ref, atol=2e-2, rtol=2e-2), (out, ref)

    print("KERNEL_OK")
</pallas_src>

<mosaic_0001>
module attributes {stable_mosaic.version = 11 : i64} {
  func.func @confidence_kernel(%arg0: memref<2x8x256xf32, #tpu.memory_space<vmem>>, %arg1: memref<256x256xbf16, #tpu.memory_space<vmem>>, %arg2: memref<11x256xf32, #tpu.memory_space<vmem>>, %arg3: memref<88x1xf32, #tpu.memory_space<vmem>>, %arg4: memref<2xf32, #tpu.memory_space<smem>>, %arg5: memref<2x1xf32, #tpu.memory_space<vmem>>) attributes {dimension_semantics = [], scalar_prefetch = 0 : i64, scratch_operands = 0 : i64, tpu.core_type = #tpu.core_type<tc>} {
    %c0 = arith.constant 0 : index
    %c0_0 = arith.constant 0 : index
    %c0_1 = arith.constant 0 : index
    %0 = vector.load %arg0[%c0, %c0_0, %c0_1] : memref<2x8x256xf32, #tpu.memory_space<vmem>>, vector<2x8x256xf32>
    %cst = arith.constant dense<0.000000e+00> : vector<2x8xf32>
    %1 = vector.multi_reduction <add>, %0, %cst [2] : vector<2x8x256xf32> to vector<2x8xf32>
    %2 = vector.shape_cast %1 : vector<2x8xf32> to vector<2x8x1xf32>
    %cst_2 = arith.constant 2.560000e+02 : f32
    %3 = vector.broadcast %cst_2 : f32 to vector<2x8x1xf32>
    %4 = arith.divf %2, %3 : vector<2x8x1xf32>
    %5 = vector.broadcast %4 : vector<2x8x1xf32> to vector<2x8x256xf32>
    %6 = arith.subf %0, %5 : vector<2x8x256xf32>
    %7 = arith.mulf %6, %6 : vector<2x8x256xf32>
    %cst_3 = arith.constant dense<0.000000e+00> : vector<2x8xf32>
    %8 = vector.multi_reduction <add>, %7, %cst_3 [2] : vector<2x8x256xf32> to vector<2x8xf32>
    %9 = vector.shape_cast %8 : vector<2x8xf32> to vector<2x8x1xf32>
    %cst_4 = arith.constant 2.560000e+02 : f32
    %10 = vector.broadcast %cst_4 : f32 to vector<2x8x1xf32>
    %11 = arith.divf %9, %10 : vector<2x8x1xf32>
    %cst_5 = arith.constant 9.99999974E-6 : f32
    %12 = vector.broadcast %cst_5 : f32 to vector<2x8x1xf32>
    %13 = arith.addf %11, %12 : vector<2x8x1xf32>
    %14 = math.rsqrt %13 : vector<2x8x1xf32>
    %15 = vector.broadcast %14 : vector<2x8x1xf32> to vector<2x8x256xf32>
    %16 = arith.mulf %6, %15 : vector<2x8x256xf32>
    %c0_6 = arith.constant 0 : index
    %c0_7 = arith.constant 0 : index
    %17 = vector.load %arg3[%c0_6, %c0_7] : memref<88x1xf32, #tpu.memory_space<vmem>>, vector<8x1xf32>
    %c8 = arith.constant 8 : index
    %c0_8 = arith.constant 0 : index
    %18 = vector.load %arg3[%c8, %c0_8] : memref<88x1xf32, #tpu.memory_space<vmem>>, vector<8x1xf32>
    %19 = vector.shape_cast %17 : vector<8x1xf32> to vector<1x8x1xf32>
    %20 = vector.broadcast %19 : vector<1x8x1xf32> to vector<2x8x256xf32>
    %21 = arith.mulf %16, %20 : vector<2x8x256xf32>
    %22 = vector.shape_cast %18 : vector<8x1xf32> to vector<1x8x1xf32>
    %23 = vector.broadcast %22 : vector<1x8x1xf32> to vector<2x8x256xf32>
    %24 = arith.addf %21, %23 : vector<2x8x256xf32>
    %cst_9 = arith.constant 0.000000e+00 : f32
    %25 = vector.broadcast %cst_9 : f32 to vector<2x8x256xf32>
    %26 = arith.maximumf %24, %25 : vector<2x8x256xf32>
    %27 = vector.shape_cast %26 : vector<2x8x256xf32> to vector<16x256xf32>
    %cst_10 = arith.constant 0.000000e+00 : f32
    %28 = vector.broadcast %cst_10 : f32 to vector<2x8x256xf32>
    %c17_i32 = arith.constant 17 : i32
    %29 = tpu.dynamic_rotate %27 by %c17_i32 dim 1 : vector<16x256xf32>, i32 -> vector<16x256xf32>
    %c16 = arith.constant 16 : index
    %c0_11 = arith.constant 0 : index
    %30 = vector.load %arg3[%c16, %c0_11] : memref<88x1xf32, #tpu.memory_space<vmem>>, vector<8x1xf32>
    %c0_12 = arith.constant 0 : index
    %c0_13 = arith.constant 0 : index
    %31 = vector.load %arg2[%c0_12, %c0_13] : memref<11x256xf32, #tpu.memory_space<vmem>>, vector<1x256xf32>
    %32 = vector.shape_cast %29 : vector<16x256xf32> to vector<2x8x256xf32>
    %33 = vector.broadcast %30 : vector<8x1xf32> to vector<8x256xf32>
    %34 = vector.broadcast %31 : vector<1x256xf32> to vector<8x256xf32>
    %35 = arith.mulf %33, %34 : vector<8x256xf32>
    %36 = vector.shape_cast %35 : vector<8x256xf32> to vector<1x8x256xf32>
    %37 = vector.broadcast %36 : vector<1x8x256xf32> to vector<2x8x256xf32>
    %38 = arith.mulf %32, %37 : vector<2x8x256xf32>
    %39 = arith.addf %28, %38 : vector<2x8x256xf32>
    %c16_i32 = arith.constant 16 : i32
    %40 = tpu.dynamic_rotate %27 by %c16_i32 dim 1 : vector<16x256xf32>, i32 -> vector<16x256xf32>
    %c24 = arith.constant 24 : index
    %c0_14 = arith.constant 0 : index
    %41 = vector.load %arg3[%c24, %c0_14] : memref<88x1xf32, #tpu.memory_space<vmem>>, vector<8x1xf32>
    %c1 = arith.constant 1 : index
    %c0_15 = arith.constant 0 : index
    %42 = vector.load %arg2[%c1, %c0_15] : memref<11x256xf32, #tpu.memory_space<vmem>>, vector<1x256xf32>
    %43 = vector.shape_cast %40 : vector<16x256xf32> to vector<2x8x256xf32>
    %44 = vector.broadcast %41 : vector<8x1xf32> to vector<8x256xf32>
    %45 = vector.broadcast %42 : vector<1x256xf32> to vector<8x256xf32>
    %46 = arith.mulf %44, %45 : vector<8x256xf32>
    %47 = vector.shape_cast %46 : vector<8x256xf32> to vector<1x8x256xf32>
    %48 = vector.broadcast %47 : vector<1x8x256xf32> to vector<2x8x256xf32>
    %49 = arith.mulf %43, %48 : vector<2x8x256xf32>
    %50 = arith.addf %39, %49 : vector<2x8x256xf32>
    %c15_i32 = arith.constant 15 : i32
    %51 = tpu.dynamic_rotate %27 by %c15_i32 dim 1 : vector<16x256xf32>, i32 -> vector<16x256xf32>
    %c32 = arith.constant 32 : index
    %c0_16 = arith.constant 0 : index
    %52 = vector.load %arg3[%c32, %c0_16] : memref<88x1xf32, #tpu.memory_space<vmem>>, vector<8x1xf32>
    %c2 = arith.constant 2 : index
    %c0_17 = arith.constant 0 : index
    %53 = vector.load %arg2[%c2, %c0_17] : memref<11x256xf32, #tpu.memory_space<vmem>>, vector<1x256xf32>
    %54 = vector.shape_cast %51 : vector<16x256xf32> to vector<2x8x256xf32>
    %55 = vector.broadcast %52 : vector<8x1xf32> to vector<8x256xf32>
    %56 = vector.broadcast %53 : vector<1x256xf32> to vector<8x256xf32>
    %57 = arith.mulf %55, %56 : vector<8x256xf32>
    %58 = vector.shape_cast %57 : vector<8x256xf32> to vector<1x8x256xf32>
    %59 = vector.broadcast %58 : vector<1x8x256xf32> to vector<2x8x256xf32>
    %60 = arith.mulf %54, %59 : vector<2x8x256xf32>
    %61 = arith.addf %50, %60 : vector<2x8x256xf32>
    %c1_i32 = arith.constant 1 : i32
    %62 = tpu.dynamic_rotate %27 by %c1_i32 dim 1 : vector<16x256xf32>, i32 -> vector<16x256xf32>
    %c40 = arith.constant 40 : index
    %c0_18 = arith.constant 0 : index
    %63 = vector.load %arg3[%c40, %c0_18] : memref<88x1xf32, #tpu.memory_space<vmem>>, vector<8x1xf32>
    %c3 = arith.constant 3 : index
    %c0_19 = arith.constant 0 : index
    %64 = vector.load %arg2[%c3, %c0_19] : memref<11x256xf32, #tpu.memory_space<vmem>>, vector<1x256xf32>
    %65 = vector.shape_cast %62 : vector<16x256xf32> to vector<2x8x256xf32>
    %66 = vector.broadcast %63 : vector<8x1xf32> to vector<8x256xf32>
    %67 = vector.broadcast %64 : vector<1x256xf32> to vector<8x256xf32>
    %68 = arith.mulf %66, %67 : vector<8x256xf32>
    %69 = vector.shape_cast %68 : vector<8x256xf32> to vector<1x8x256xf32>
    %70 = vector.broadcast %69 : vector<1x8x256xf32> to vector<2x8x256xf32>
    %71 = arith.mulf %65, %70 : vector<2x8x256xf32>
    %72 = arith.addf %61, %71 : vector<2x8x256xf32>
    %c48 = arith.constant 48 : index
    %c0_20 = arith.constant 0 : index
    %73 = vector.load %arg3[%c48, %c0_20] : memref<88x1xf32, #tpu.memory_space<vmem>>, vector<8x1xf32>
    %c4 = arith.constant 4 : index
    %c0_21 = arith.constant 0 : index
    %74 = vector.load %arg2[%c4, %c0_21] : memref<11x256xf32, #tpu.memory_space<vmem>>, vector<1x256xf32>
    %75 = vector.shape_cast %27 : vector<16x256xf32> to vector<2x8x256xf32>
    %76 = vector.broadcast %73 : vector<8x1xf32> to vector<8x256xf32>
    %77 = vector.broadcast %74 : vector<1x256xf32> to vector<8x256xf32>
    %78 = arith.mulf %76, %77 : vector<8x256xf32>
    %79 = vector.shape_cast %78 : vector<8x256xf32> to vector<1x8x256xf32>
    %80 = vector.broadcast %79 : vector<1x8x256xf32> to vector<2x8x256xf32>
    %81 = arith.mulf %75, %80 : vector<2x8x256xf32>
    %82 = arith.addf %72, %81 : vector<2x8x256xf32>
    %c255_i32 = arith.constant 255 : i32
    %83 = tpu.dynamic_rotate %27 by %c255_i32 dim 1 : vector<16x256xf32>, i32 -> vector<16x256xf32>
    %c56 = arith.constant 56 : index
    %c0_22 = arith.constant 0 : index
    %84 = vector.load %arg3[%c56, %c0_22] : memref<88x1xf32, #tpu.memory_space<vmem>>, vector<8x1xf32>
    %c5 = arith.constant 5 : index
    %c0_23 = arith.constant 0 : index
    %85 = vector.load %arg2[%c5, %c0_23] : memref<11x256xf32, #tpu.memory_space<vmem>>, vector<1x256xf32>
    %86 = vector.shape_cast %83 : vector<16x256xf32> to vector<2x8x256xf32>
    %87 = vector.broadcast %84 : vector<8x1xf32> to vector<8x256xf32>
    %88 = vector.broadcast %85 : vector<1x256xf32> to vector<8x256xf32>
    %89 = arith.mulf %87, %88 : vector<8x256xf32>
    %90 = vector.shape_cast %89 : vector<8x256xf32> to vector<1x8x256xf32>
    %91 = vector.broadcast %90 : vector<1x8x256xf32> to vector<2x8x256xf32>
    %92 = arith.mulf %86, %91 : vector<2x8x256xf32>
    %93 = arith.addf %82, %92 : vector<2x8x256xf32>
    %c241_i32 = arith.constant 241 : i32
    %94 = tpu.dynamic_rotate %27 by %c241_i32 dim 1 : vector<16x256xf32>, i32 -> vector<16x256xf32>
    %c64 = arith.constant 64 : index
    %c0_24 = arith.constant 0 : index
    %95 = vector.load %arg3[%c64, %c0_24] : memref<88x1xf32, #tpu.memory_space<vmem>>, vector<8x1xf32>
    %c6 = arith.constant 6 : index
    %c0_25 = arith.constant 0 : index
    %96 = vector.load %arg2[%c6, %c0_25] : memref<11x256xf32, #tpu.memory_space<vmem>>, vector<1x256xf32>
    %97 = vector.shape_cast %94 : vector<16x256xf32> to vector<2x8x256xf32>
    %98 = vector.broadcast %95 : vector<8x1xf32> to vector<8x256xf32>
    %99 = vector.broadcast %96 : vector<1x256xf32> to vector<8x256xf32>
    %100 = arith.mulf %98, %99 : vector<8x256xf32>
    %101 = vector.shape_cast %100 : vector<8x256xf32> to vector<1x8x256xf32>
    %102 = vector.broadcast %101 : vector<1x8x256xf32> to vector<2x8x256xf32>
    %103 = arith.mulf %97, %102 : vector<2x8x256xf32>
    %104 = arith.addf %93, %103 : vector<2x8x256xf32>
    %c240_i32 = arith.constant 240 : i32
    %105 = tpu.dynamic_rotate %27 by %c240_i32 dim 1 : vector<16x256xf32>, i32 -> vector<16x256xf32>
    %c72 = arith.constant 72 : index
    %c0_26 = arith.constant 0 : index
    %106 = vector.load %arg3[%c72, %c0_26] : memref<88x1xf32, #tpu.memory_space<vmem>>, vector<8x1xf32>
    %c7 = arith.constant 7 : index
    %c0_27 = arith.constant 0 : index
    %107 = vector.load %arg2[%c7, %c0_27] : memref<11x256xf32, #tpu.memory_space<vmem>>, vector<1x256xf32>
    %108 = vector.shape_cast %105 : vector<16x256xf32> to vector<2x8x256xf32>
    %109 = vector.broadcast %106 : vector<8x1xf32> to vector<8x256xf32>
    %110 = vector.broadcast %107 : vector<1x256xf32> to vector<8x256xf32>
    %111 = arith.mulf %109, %110 : vector<8x256xf32>
    %112 = vector.shape_cast %111 : vector<8x256xf32> to vector<1x8x256xf32>
    %113 = vector.broadcast %112 : vector<1x8x256xf32> to vector<2x8x256xf32>
    %114 = arith.mulf %108, %113 : vector<2x8x256xf32>
    %115 = arith.addf %104, %114 : vector<2x8x256xf32>
    %c239_i32 = arith.constant 239 : i32
    %116 = tpu.dynamic_rotate %27 by %c239_i32 dim 1 : vector<16x256xf32>, i32 -> vector<16x256xf32>
    %c80 = arith.constant 80 : index
    %c0_28 = arith.constant 0 : index
    %117 = vector.load %arg3[%c80, %c0_28] : memref<88x1xf32, #tpu.memory_space<vmem>>, vector<8x1xf32>
    %c8_29 = arith.constant 8 : index
    %c0_30 = arith.constant 0 : index
    %118 = vector.load %arg2[%c8_29, %c0_30] : memref<11x256xf32, #tpu.memory_space<vmem>>, vector<1x256xf32>
    %119 = vector.shape_cast %116 : vector<16x256xf32> to vector<2x8x256xf32>
    %120 = vector.broadcast %117 : vector<8x1xf32> to vector<8x256xf32>
    %121 = vector.broadcast %118 : vector<1x256xf32> to vector<8x256xf32>
    %122 = arith.mulf %120, %121 : vector<8x256xf32>
    %123 = vector.shape_cast %122 : vector<8x256xf32> to vector<1x8x256xf32>
    %124 = vector.broadcast %123 : vector<1x8x256xf32> to vector<2x8x256xf32>
    %125 = arith.mulf %119, %124 : vector<2x8x256xf32>
    %126 = arith.addf %115, %125 : vector<2x8x256xf32>
    %cst_31 = arith.constant dense<0.000000e+00> : vector<2x256xf32>
    %127 = vector.multi_reduction <add>, %126, %cst_31 [1] : vector<2x8x256xf32> to vector<2x256xf32>
    %c0_32 = arith.constant 0 : index
    %128 = memref.load %arg4[%c0_32] : memref<2xf32, #tpu.memory_space<smem>>
    %129 = vector.broadcast %128 : f32 to vector<2x256xf32>
    %130 = arith.addf %127, %129 : vector<2x256xf32>
    %131 = arith.truncf %130 : vector<2x256xf32> to vector<2x256xbf16>
    %c0_33 = arith.constant 0 : index
    %c0_34 = arith.constant 0 : index
    %132 = vector.load %arg1[%c0_33, %c0_34] : memref<256x256xbf16, #tpu.memory_space<vmem>>, vector<256x256xbf16>
    %cst_35 = arith.constant dense<0.000000e+00> : vector<2x256xf32>
    %133 = tpu.matmul %131, %132, %cst_35 {dimension_numbers = #tpu.dot_dimension_numbers<[1], [0], [0], [1], [0, 0, 1, 1], [], []>} : vector<2x256xbf16>, vector<256x256xbf16>, vector<2x256xf32> -> vector<2x256xf32>
    %c9 = arith.constant 9 : index
    %c0_36 = arith.constant 0 : index
    %134 = vector.load %arg2[%c9, %c0_36] : memref<11x256xf32, #tpu.memory_space<vmem>>, vector<1x256xf32>
    %135 = vector.broadcast %134 : vector<1x256xf32> to vector<2x256xf32>
    %136 = arith.addf %133, %135 : vector<2x256xf32>
    %cst_37 = arith.constant 0.000000e+00 : f32
    %137 = vector.broadcast %cst_37 : f32 to vector<2x256xf32>
    %138 = arith.maximumf %136, %137 : vector<2x256xf32>
    %c10 = arith.constant 10 : index
    %c0_38 = arith.constant 0 : index
    %139 = vector.load %arg2[%c10, %c0_38] : memref<11x256xf32, #tpu.memory_space<vmem>>, vector<1x256xf32>
    %140 = vector.broadcast %139 : vector<1x256xf32> to vector<2x256xf32>
    %141 = arith.mulf %138, %140 : vector<2x256xf32>
    %cst_39 = arith.constant dense<0.000000e+00> : vector<2xf32>
    %142 = vector.multi_reduction <add>, %141, %cst_39 [1] : vector<2x256xf32> to vector<2xf32>
    %143 = vector.shape_cast %142 : vector<2xf32> to vector<2x1xf32>
    %c1_40 = arith.constant 1 : index
    %144 = memref.load %arg4[%c1_40] : memref<2xf32, #tpu.memory_space<smem>>
    %145 = vector.broadcast %144 : f32 to vector<2x1xf32>
    %146 = arith.addf %143, %145 : vector<2x1xf32>
    %c0_41 = arith.constant 0 : index
    %c0_42 = arith.constant 0 : index
    %147 = vector.load %arg5[%c0_41, %c0_42] : memref<2x1xf32, #tpu.memory_space<vmem>>, vector<2x1xf32>
    tpu.vector_store %arg5[%c0_41, %c0_42], %146 {strides = array<i32>} : memref<2x1xf32, #tpu.memory_space<vmem>>, vector<2x1xf32>,
    return
  }
}

</mosaic_0001>

<llo_original>
// kernel: confidence_forward.1
$region0: #{confidence_forward.1}
  #allocation0 [shape = 'u32[]', space=smem, size = 0x4, offset = 0x4, fixed_abs, tag = 'smem constant byte address 0x4 - core index']
  #allocation1 [shape = 'u32[144,128]{1,0:T(1,128)}', space=vmem, size = 0x12000, scoped, tag = 'internal scratch']
  %s0 = inlined_call_operand.vmem [shape: f32[2,8,256], index: 0, kind: input, shape index: {}]
  %s1 = inlined_call_operand.vmem [shape: bf16[256,256], index: 1, kind: input, shape index: {}]
  %s2 = inlined_call_operand.vmem [shape: f32[11,256], index: 2, kind: input, shape index: {}]
  %s3 = inlined_call_operand.vmem [shape: f32[88,1], index: 3, kind: input, shape index: {}]
  %s4 = inlined_call_operand.vmem [shape: f32[2], index: 4, kind: input, shape index: {}]
  %s5 = inlined_call_operand.vmem [shape: f32[2,1], index: 5, kind: output, shape index: {}]
  %s6 = sld [smem:[#allocation0]]
  $region34: #{confidence_forward.1} parent=0
    _
  %s8 = ssub.s32 1, %s6
  %s9 = scalar_select 0, %s8, %s6
  $region1: #{confidence_forward.1} parent=0
    #allocation2 [shape = 'u8[512]{0}', space=smem, size = 0x200, scoped, tag = 'input window, operand 4, single buffered']
    #allocation3 [shape = 's32[1]{0}', space=sflag, size = 0x4, scoped, tag = 'scoped memory for confidence_forward.1']
    %10 = vsyncpa [#allocation3], 0
    // Predicated region
    $region2: #{confidence_forward.1} parent=1 // pred_check
      _
    $region3: #{confidence_forward.1} parent=1 // pred_check_branch
      %12 = sbr.rel (0) target = $region5
    $region4: #{confidence_forward.1} parent=1 // pred_region
      _
    $region5: #{confidence_forward.1} parent=1 // pred_fallthru
      _
    // Predicated region
    $region6: #{confidence_forward.1} parent=1 // pred_check
      _
    $region7: #{confidence_forward.1} parent=1 // pred_check_branch
      %14 = sbr.rel (0) target = $region9
    $region8: #{confidence_forward.1} parent=1 // pred_region
      _
    $region9: #{confidence_forward.1} parent=1 // pred_fallthru
      _
    // Predicated region
    $region10: #{confidence_forward.1} parent=1 // pred_check
      _
    $region11: #{confidence_forward.1} parent=1 // pred_check_branch
      %16 = sbr.rel (0) target = $region13
    $region12: #{confidence_forward.1} parent=1 // pred_region
      _
    $region13: #{confidence_forward.1} parent=1 // pred_fallthru
      _
    // Predicated region
    $region14: #{confidence_forward.1} parent=1 // pred_check
      _
    $region15: #{confidence_forward.1} parent=1 // pred_check_branch
      %18 = sbr.rel (0) target = $region17
    $region16: #{confidence_forward.1} parent=1 // pred_region
      _
    $region17: #{confidence_forward.1} parent=1 // pred_fallthru
      _
    // Predicated region
    $region18: #{confidence_forward.1} parent=1 // pred_check
      _
    $region19: #{confidence_forward.1} parent=1 // pred_check_branch
      %20 = sbr.rel (0) target = $region21
    $region20: #{confidence_forward.1} parent=1 // pred_region
      %s22 = ssub.s32 16, 16
      %23 = vsyncadd [#allocation3], %s22
      %s25 = sshll.u32 %s4, 4
      %s26 = int_to_ptr.vmem [resolvable:$true] %s25
      %28 = dma.vmem_to_smem %s26, 16, [#allocation2], [#allocation3]
    $region21: #{confidence_forward.1} parent=1 // pred_fallthru
      _
    // Predicated region
    $region22: #{confidence_forward.1} parent=1 // pred_check
      _
    $region23: #{confidence_forward.1} parent=1 // pred_check_branch
      %30 = sbr.rel (0) target = $region25
    $region24: #{confidence_forward.1} parent=1 // pred_region
      %31 = dma.done [#allocation3], 16
    $region25: #{confidence_forward.1} parent=1 // pred_fallthru
      _
    %32 = sfence
    %v33 = vld [vmem:[%s0] sm:$0xff]
    %v34 = vld [vmem:[%s0 + $0x8] sm:$0xff]
    %v35 = vld [vmem:[%s0 + $0x10] sm:$0xff]
    %v36 = vld [vmem:[%s0 + $0x18] sm:$0xff]
    %v37 = vadd.f32 %v33, %v34
    %38 = vadd.xlane.f32.xlu0 %v37
    %v39 = vpop.xlane.xlu0 %38
    %v40 = vadd.f32 %v35, %v36
    %41 = vadd.xlane.f32.xlu0 %v40
    %v42 = vpop.xlane.xlu0 %41
    %v43 = vrcp.pop 256.0
    %v44 = vmul.f32 %v39, %v43
    %v45 = vmul.f32 %v42, %v43
    %v46 = vsub.f32 %v33, %v44
    %v47 = vsub.f32 %v34, %v44
    %v48 = vsub.f32 %v35, %v45
    %v49 = vsub.f32 %v36, %v45
    %v50 = vmul.f32 %v46, %v46
    %v51 = vmul.f32 %v47, %v47
    %v52 = vmul.f32 %v48, %v48
    %v53 = vmul.f32 %v49, %v49
    %v54 = vadd.f32 %v50, %v51
    %55 = vadd.xlane.f32.xlu0 %v54
    %v56 = vpop.xlane.xlu0 %55
    %v57 = vadd.f32 %v52, %v53
    %58 = vadd.xlane.f32.xlu0 %v57
    %v59 = vpop.xlane.xlu0 %58
    %v60 = vmul.f32 %v56, %v43
    %v61 = vmul.f32 %v59, %v43
    %v62 = vadd.f32 %v60, 1e-05
    %v63 = vadd.f32 %v61, 1e-05
    %v64 = vrsqrt.pop %v62
    %v65 = vrsqrt.pop %v63
    %v66 = vmul.f32 %v46, %v64
    %v67 = vmul.f32 %v47, %v64
    %v68 = vmul.f32 %v48, %v65
    %v69 = vmul.f32 %v49, %v65
    %v70 = vld [vmem:[%s3] sm:$0xff]
    %v71 = vld [vmem:[%s3 + $0x8] sm:$0xff]
    %73 = vset.pattern.permute.xlu0 0
    %74 = vperm.xlu0 %73, %v70
    %v75 = vpop.permute.xlu0 %74
    %v77 = vmul.f32 %v66, %v75
    %v78 = vmul.f32 %v67, %v75
    %v79 = vmul.f32 %v68, %v75
    %v80 = vmul.f32 %v69, %v75
    %82 = vset.pattern.permute.xlu0 0
    %83 = vperm.xlu0 %82, %v71
    %v84 = vpop.permute.xlu0 %83
    %v86 = vadd.f32 %v77, %v84
    %v87 = vadd.f32 %v78, %v84
    %v88 = vadd.f32 %v79, %v84
    %v89 = vadd.f32 %v80, %v84
    %v90 = vmax.f32 %v86, 0.0
    %v91 = vmax.f32 %v87, 0.0
    %v92 = vmax.f32 %v88, 0.0
    %v93 = vmax.f32 %v89, 0.0
    %94 = vrot.lane.b32.xlu0 %v90, 17
    %v95 = vpop.permute.xlu0 %94
    %96 = vrot.lane.b32.xlu0 %v92, 17
    %v97 = vpop.permute.xlu0 %96
    %98 = vrot.lane.b32.xlu0 %v91, 17
    %v99 = vpop.permute.xlu0 %98
    %100 = vrot.lane.b32.xlu0 %v93, 17
    %v101 = vpop.permute.xlu0 %100
    %v102 = vlaneseq
    %v103 = vand.u32 %v102, 127
    %vm104 = vcmp.lt.s32.totalorder %v103, 17
    %v105 = vsel %vm104, %v95, %v99
    %v106 = vsel %vm104, %v97, %v101
    %v107 = vsel %vm104, %v99, %v95
    %v108 = vsel %vm104, %v101, %v97
    %v109 = vld [vmem:[%s3 + $0x10] sm:$0xff]
    %v110 = vld [vmem:[%s2] ss:$8 sm:$0x3]
    %112 = vset.pattern.permute.xlu0 0
    %113 = vperm.xlu0 %112, %v109
    %v114 = vpop.permute.xlu0 %113
    %v117 = vlaneseq
    %v118 = vshrl.u32 %v117, 7
    %v119 = vsub.s32 0, %v118
    %v120 = vrot.slane %v110, %v119
    %v121 = vlaneseq
    %v122 = vshrl.u32 %v121, 7
    %v123 = vsub.s32 1, %v122
    %v124 = vrot.slane %v110, %v123
    %v127 = vmul.f32 %v114, %v120
    %v128 = vmul.f32 %v114, %v124
    %v129 = vmul.f32 %v107, %v127
    %v130 = vmul.f32 %v105, %v128
    %v131 = vmul.f32 %v108, %v127
    %v132 = vmul.f32 %v106, %v128
    %v133 = vadd.f32 %v129, 0.0
    %v134 = vadd.f32 %v130, 0.0
    %v135 = vadd.f32 %v131, 0.0
    %v136 = vadd.f32 %v132, 0.0
    %137 = vrot.lane.b32.xlu0 %v90, 16
    %v138 = vpop.permute.xlu0 %137
    %139 = vrot.lane.b32.xlu0 %v92, 16
    %v140 = vpop.permute.xlu0 %139
    %141 = vrot.lane.b32.xlu0 %v91, 16
    %v142 = vpop.permute.xlu0 %141
    %143 = vrot.lane.b32.xlu0 %v93, 16
    %v144 = vpop.permute.xlu0 %143
    %vm145 = vcmp.lt.s32.totalorder %v103, 16
    %v146 = vsel %vm145, %v138, %v142
    %v147 = vsel %vm145, %v140, %v144
    %v148 = vsel %vm145, %v142, %v138
    %v149 = vsel %vm145, %v144, %v140
    %v150 = vld [vmem:[%s3 + $0x18] sm:$0xff]
    %s151 = scalar_lea.vmem %s2, 1
    %v152 = vld [vmem:[%s151] ss:$8 sm:$0x3]
    %154 = vset.pattern.permute.xlu0 0
    %155 = vperm.xlu0 %154, %v150
    %v156 = vpop.permute.xlu0 %155
    %v159 = vlaneseq
    %v160 = vshrl.u32 %v159, 7
    %v161 = vsub.s32 0, %v160
    %v162 = vrot.slane %v152, %v161
    %v163 = vlaneseq
    %v164 = vshrl.u32 %v163, 7
    %v165 = vsub.s32 1, %v164
    %v166 = vrot.slane %v152, %v165
    %v169 = vmul.f32 %v156, %v162
    %v170 = vmul.f32 %v156, %v166
    %v171 = vmul.f32 %v148, %v169
    %v172 = vmul.f32 %v146, %v170
    %v173 = vmul.f32 %v149, %v169
    %v174 = vmul.f32 %v147, %v170
    %v175 = vadd.f32 %v133, %v171
    %v176 = vadd.f32 %v134, %v172
    %v177 = vadd.f32 %v135, %v173
    %v178 = vadd.f32 %v136, %v174
    %179 = vrot.lane.b32.xlu0 %v90, 15
    %v180 = vpop.permute.xlu0 %179
    %181 = vrot.lane.b32.xlu0 %v92, 15
    %v182 = vpop.permute.xlu0 %181
    %183 = vrot.lane.b32.xlu0 %v91, 15
    %v184 = vpop.permute.xlu0 %183
    %185 = vrot.lane.b32.xlu0 %v93, 15
    %v186 = vpop.permute.xlu0 %185
    %vm187 = vcmp.lt.s32.totalorder %v103, 15
    %v188 = vsel %vm187, %v180, %v184
    %v189 = vsel %vm187, %v182, %v186
    %v190 = vsel %vm187, %v184, %v180
    %v191 = vsel %vm187, %v186, %v182
    %v192 = vld [vmem:[%s3 + $0x20] sm:$0xff]
    %s193 = scalar_lea.vmem %s2, 2
    %v194 = vld [vmem:[%s193] ss:$8 sm:$0x3]
    %196 = vset.pattern.permute.xlu0 0
    %197 = vperm.xlu0 %196, %v192
    %v198 = vpop.permute.xlu0 %197
    %v201 = vlaneseq
    %v202 = vshrl.u32 %v201, 7
    %v203 = vsub.s32 0, %v202
    %v204 = vrot.slane %v194, %v203
    %v205 = vlaneseq
    %v206 = vshrl.u32 %v205, 7
    %v207 = vsub.s32 1, %v206
    %v208 = vrot.slane %v194, %v207
    %v211 = vmul.f32 %v198, %v204
    %v212 = vmul.f32 %v198, %v208
    %v213 = vmul.f32 %v190, %v211
    %v214 = vmul.f32 %v188, %v212
    %v215 = vmul.f32 %v191, %v211
    %v216 = vmul.f32 %v189, %v212
    %v217 = vadd.f32 %v175, %v213
    %v218 = vadd.f32 %v176, %v214
    %v219 = vadd.f32 %v177, %v215
    %v220 = vadd.f32 %v178, %v216
    %221 = vrot.lane.b32.xlu0 %v90, 1
    %v222 = vpop.permute.xlu0 %221
    %223 = vrot.lane.b32.xlu0 %v92, 1
    %v224 = vpop.permute.xlu0 %223
    %225 = vrot.lane.b32.xlu0 %v91, 1
    %v226 = vpop.permute.xlu0 %225
    %227 = vrot.lane.b32.xlu0 %v93, 1
    %v228 = vpop.permute.xlu0 %227
    %vm229 = vcmp.lt.s32.totalorder %v103, 1
    %v230 = vsel %vm229, %v222, %v226
    %v231 = vsel %vm229, %v224, %v228
    %v232 = vsel %vm229, %v226, %v222
    %v233 = vsel %vm229, %v228, %v224
    %v234 = vld [vmem:[%s3 + $0x28] sm:$0xff]
    %s235 = scalar_lea.vmem %s2, 3
    %v236 = vld [vmem:[%s235] ss:$8 sm:$0x3]
    %238 = vset.pattern.permute.xlu0 0
    %239 = vperm.xlu0 %238, %v234
    %v240 = vpop.permute.xlu0 %239
    %v243 = vlaneseq
    %v244 = vshrl.u32 %v243, 7
    %v245 = vsub.s32 0, %v244
    %v246 = vrot.slane %v236, %v245
    %v247 = vlaneseq
    %v248 = vshrl.u32 %v247, 7
    %v249 = vsub.s32 1, %v248
    %v250 = vrot.slane %v236, %v249
    %v253 = vmul.f32 %v240, %v246
    %v254 = vmul.f32 %v240, %v250
    %v255 = vmul.f32 %v232, %v253
    %v256 = vmul.f32 %v230, %v254
    %v257 = vmul.f32 %v233, %v253
    %v258 = vmul.f32 %v231, %v254
    %v259 = vadd.f32 %v217, %v255
    %v260 = vadd.f32 %v218, %v256
    %v261 = vadd.f32 %v219, %v257
    %v262 = vadd.f32 %v220, %v258
    %v263 = vld [vmem:[%s3 + $0x30] sm:$0xff]
    %s264 = scalar_lea.vmem %s2, 4
    %v265 = vld [vmem:[%s264] ss:$8 sm:$0x3]
    %267 = vset.pattern.permute.xlu0 0
    %268 = vperm.xlu0 %267, %v263
    %v269 = vpop.permute.xlu0 %268
    %v272 = vlaneseq
    %v273 = vshrl.u32 %v272, 7
    %v274 = vsub.s32 0, %v273
    %v275 = vrot.slane %v265, %v274
    %v276 = vlaneseq
    %v277 = vshrl.u32 %v276, 7
    %v278 = vsub.s32 1, %v277
    %v279 = vrot.slane %v265, %v278
    %v282 = vmul.f32 %v269, %v275
    %v283 = vmul.f32 %v269, %v279
    %v284 = vmul.f32 %v90, %v282
    %v285 = vmul.f32 %v91, %v283
    %v286 = vmul.f32 %v92, %v282
    %v287 = vmul.f32 %v93, %v283
    %v288 = vadd.f32 %v259, %v284
    %v289 = vadd.f32 %v260, %v285
    %v290 = vadd.f32 %v261, %v286
    %v291 = vadd.f32 %v262, %v287
    %292 = vrot.lane.b32.xlu0 %v90, 127
    %v293 = vpop.permute.xlu0 %292
    %294 = vrot.lane.b32.xlu0 %v92, 127
    %v295 = vpop.permute.xlu0 %294
    %296 = vrot.lane.b32.xlu0 %v91, 127
    %v297 = vpop.permute.xlu0 %296
    %298 = vrot.lane.b32.xlu0 %v93, 127
    %v299 = vpop.permute.xlu0 %298
    %vm300 = vcmp.lt.s32.totalorder %v103, 127
    %v301 = vsel %vm300, %v293, %v297
    %v302 = vsel %vm300, %v295, %v299
    %v303 = vsel %vm300, %v297, %v293
    %v304 = vsel %vm300, %v299, %v295
    %v305 = vld [vmem:[%s3 + $0x38] sm:$0xff]
    %s306 = scalar_lea.vmem %s2, 5
    %v307 = vld [vmem:[%s306] ss:$8 sm:$0x3]
    %309 = vset.pattern.permute.xlu0 0
    %310 = vperm.xlu0 %309, %v305
    %v311 = vpop.permute.xlu0 %310
    %v314 = vlaneseq
    %v315 = vshrl.u32 %v314, 7
    %v316 = vsub.s32 0, %v315
    %v317 = vrot.slane %v307, %v316
    %v318 = vlaneseq
    %v319 = vshrl.u32 %v318, 7
    %v320 = vsub.s32 1, %v319
    %v321 = vrot.slane %v307, %v320
    %v324 = vmul.f32 %v311, %v317
    %v325 = vmul.f32 %v311, %v321
    %v326 = vmul.f32 %v301, %v324
    %v327 = vmul.f32 %v303, %v325
    %v328 = vmul.f32 %v302, %v324
    %v329 = vmul.f32 %v304, %v325
    %v330 = vadd.f32 %v288, %v326
    %v331 = vadd.f32 %v289, %v327
    %v332 = vadd.f32 %v290, %v328
    %v333 = vadd.f32 %v291, %v329
    %334 = vrot.lane.b32.xlu0 %v90, 113
    %v335 = vpop.permute.xlu0 %334
    %336 = vrot.lane.b32.xlu0 %v92, 113
    %v337 = vpop.permute.xlu0 %336
    %338 = vrot.lane.b32.xlu0 %v91, 113
    %v339 = vpop.permute.xlu0 %338
    %340 = vrot.lane.b32.xlu0 %v93, 113
    %v341 = vpop.permute.xlu0 %340
    %vm342 = vcmp.lt.s32.totalorder %v103, 113
    %v343 = vsel %vm342, %v335, %v339
    %v344 = vsel %vm342, %v337, %v341
    %v345 = vsel %vm342, %v339, %v335
    %v346 = vsel %vm342, %v341, %v337
    %v347 = vld [vmem:[%s3 + $0x40] sm:$0xff]
    %s348 = scalar_lea.vmem %s2, 6
    %v349 = vld [vmem:[%s348] ss:$8 sm:$0x3]
    %351 = vset.pattern.permute.xlu0 0
    %352 = vperm.xlu0 %351, %v347
    %v353 = vpop.permute.xlu0 %352
    %v356 = vlaneseq
    %v357 = vshrl.u32 %v356, 7
    %v358 = vsub.s32 0, %v357
    %v359 = vrot.slane %v349, %v358
    %v360 = vlaneseq
    %v361 = vshrl.u32 %v360, 7
    %v362 = vsub.s32 1, %v361
    %v363 = vrot.slane %v349, %v362
    %v366 = vmul.f32 %v353, %v359
    %v367 = vmul.f32 %v353, %v363
    %v368 = vmul.f32 %v343, %v366
    %v369 = vmul.f32 %v345, %v367
    %v370 = vmul.f32 %v344, %v366
    %v371 = vmul.f32 %v346, %v367
    %v372 = vadd.f32 %v330, %v368
    %v373 = vadd.f32 %v331, %v369
    %v374 = vadd.f32 %v332, %v370
    %v375 = vadd.f32 %v333, %v371
    %376 = vrot.lane.b32.xlu0 %v90, 112
    %v377 = vpop.permute.xlu0 %376
    %378 = vrot.lane.b32.xlu0 %v92, 112
    %v379 = vpop.permute.xlu0 %378
    %380 = vrot.lane.b32.xlu0 %v91, 112
    %v381 = vpop.permute.xlu0 %380
    %382 = vrot.lane.b32.xlu0 %v93, 112
    %v383 = vpop.permute.xlu0 %382
    %vm384 = vcmp.lt.s32.totalorder %v103, 112
    %v385 = vsel %vm384, %v377, %v381
    %v386 = vsel %vm384, %v379, %v383
    %v387 = vsel %vm384, %v381, %v377
    %v388 = vsel %vm384, %v383, %v379
    %v389 = vld [vmem:[%s3 + $0x48] sm:$0xff]
    %s390 = scalar_lea.vmem %s2, 7
    %v391 = vld [vmem:[%s390] ss:$8 sm:$0x3]
    %393 = vset.pattern.permute.xlu0 0
    %394 = vperm.xlu0 %393, %v389
    %v395 = vpop.permute.xlu0 %394
    %v398 = vlaneseq
    %v399 = vshrl.u32 %v398, 7
    %v400 = vsub.s32 0, %v399
    %v401 = vrot.slane %v391, %v400
    %v402 = vlaneseq
    %v403 = vshrl.u32 %v402, 7
    %v404 = vsub.s32 1, %v403
    %v405 = vrot.slane %v391, %v404
    %v408 = vmul.f32 %v395, %v401
    %v409 = vmul.f32 %v395, %v405
    %v410 = vmul.f32 %v385, %v408
    %v411 = vmul.f32 %v387, %v409
    %v412 = vmul.f32 %v386, %v408
    %v413 = vmul.f32 %v388, %v409
    %v414 = vadd.f32 %v372, %v410
    %v415 = vadd.f32 %v373, %v411
    %v416 = vadd.f32 %v374, %v412
    %v417 = vadd.f32 %v375, %v413
    %418 = vrot.lane.b32.xlu0 %v90, 111
    %v419 = vpop.permute.xlu0 %418
    %420 = vrot.lane.b32.xlu0 %v92, 111
    %v421 = vpop.permute.xlu0 %420
    %422 = vrot.lane.b32.xlu0 %v91, 111
    %v423 = vpop.permute.xlu0 %422
    %424 = vrot.lane.b32.xlu0 %v93, 111
    %v425 = vpop.permute.xlu0 %424
    %vm426 = vcmp.lt.s32.totalorder %v103, 111
    %v427 = vsel %vm426, %v419, %v423
    %v428 = vsel %vm426, %v421, %v425
    %v429 = vsel %vm426, %v423, %v419
    %v430 = vsel %vm426, %v425, %v421
    %v431 = vld [vmem:[%s3 + $0x50] sm:$0xff]
    %s432 = scalar_lea.vmem %s2, 16
    %v433 = vld [vmem:[%s432] ss:$8 sm:$0x3]
    %435 = vset.pattern.permute.xlu0 0
    %436 = vperm.xlu0 %435, %v431
    %v437 = vpop.permute.xlu0 %436
    %v440 = vlaneseq
    %v441 = vshrl.u32 %v440, 7
    %v442 = vsub.s32 0, %v441
    %v443 = vrot.slane %v433, %v442
    %v444 = vlaneseq
    %v445 = vshrl.u32 %v444, 7
    %v446 = vsub.s32 1, %v445
    %v447 = vrot.slane %v433, %v446
    %v450 = vmul.f32 %v437, %v443
    %v451 = vmul.f32 %v437, %v447
    %v452 = vmul.f32 %v427, %v450
    %v453 = vmul.f32 %v429, %v451
    %v454 = vmul.f32 %v428, %v450
    %v455 = vmul.f32 %v430, %v451
    %v456 = vadd.f32 %v414, %v452
    %v457 = vadd.f32 %v415, %v453
    %v458 = vadd.f32 %v416, %v454
    %v459 = vadd.f32 %v417, %v455
    %v460 = vrot.slane %v456, 4
    %v461 = vadd.f32 %v456, %v460
    %v462 = vrot.slane %v461, 2
    %v463 = vadd.f32 %v461, %v462
    %v464 = vrot.slane %v463, 1
    %v465 = vadd.f32 %v463, %v464
    %v466 = vrot.slane %v457, 4
    %v467 = vadd.f32 %v457, %v466
    %v468 = vrot.slane %v467, 2
    %v469 = vadd.f32 %v467, %v468
    %v470 = vrot.slane %v469, 1
    %v471 = vadd.f32 %v469, %v470
    %v472 = vrot.slane %v458, 4
    %v473 = vadd.f32 %v458, %v472
    %v474 = vrot.slane %v473, 2
    %v475 = vadd.f32 %v473, %v474
    %v476 = vrot.slane %v475, 1
    %v477 = vadd.f32 %v475, %v476
    %v478 = vrot.slane %v459, 4
    %v479 = vadd.f32 %v459, %v478
    %v480 = vrot.slane %v479, 2
    %v481 = vadd.f32 %v479, %v480
    %v482 = vrot.slane %v481, 1
    %v483 = vadd.f32 %v481, %v482
    %s484 = sld [smem:[#allocation2]]
    %v485 = vstv %s484
    %v486 = vadd.f32 %v465, %v485
    %v487 = vadd.f32 %v471, %v485
    %v488 = vadd.f32 %v477, %v485
    %v489 = vadd.f32 %v483, %v485
    %v490 = vpack.c.bf16 %v486, %v486
    %v491 = vpack.c.bf16 %v487, %v487
    %v492 = vpack.c.bf16 %v488, %v488
    %v493 = vpack.c.bf16 %v489, %v489
    %v494 = vld [vmem:[%s1] sm:$0xff]
    %v495 = vld [vmem:[%s1 + $0x8] sm:$0xff]
    %v496 = vld [vmem:[%s1 + $0x10] sm:$0xff]
    %v497 = vld [vmem:[%s1 + $0x18] sm:$0xff]
    %v498 = vld [vmem:[%s1 + $0x20] sm:$0xff]
    %v499 = vld [vmem:[%s1 + $0x28] sm:$0xff]
    %v500 = vld [vmem:[%s1 + $0x30] sm:$0xff]
    %v501 = vld [vmem:[%s1 + $0x38] sm:$0xff]
    %v502 = vld [vmem:[%s1 + $0x40] sm:$0xff]
    %v503 = vld [vmem:[%s1 + $0x48] sm:$0xff]
    %v504 = vld [vmem:[%s1 + $0x50] sm:$0xff]
    %v505 = vld [vmem:[%s1 + $0x58] sm:$0xff]
    %v506 = vld [vmem:[%s1 + $0x60] sm:$0xff]
    %v507 = vld [vmem:[%s1 + $0x68] sm:$0xff]
    %v508 = vld [vmem:[%s1 + $0x70] sm:$0xff]
    %v509 = vld [vmem:[%s1 + $0x78] sm:$0xff]
    %v510 = vld [vmem:[%s1 + $0x80] sm:$0xff]
    %v511 = vld [vmem:[%s1 + $0x88] sm:$0xff]
    %v512 = vld [vmem:[%s1 + $0x90] sm:$0xff]
    %v513 = vld [vmem:[%s1 + $0x98] sm:$0xff]
    %v514 = vld [vmem:[%s1 + $0xa0] sm:$0xff]
    %v515 = vld [vmem:[%s1 + $0xa8] sm:$0xff]
    %v516 = vld [vmem:[%s1 + $0xb0] sm:$0xff]
    %v517 = vld [vmem:[%s1 + $0xb8] sm:$0xff]
    %v518 = vld [vmem:[%s1 + $0xc0] sm:$0xff]
    %v519 = vld [vmem:[%s1 + $0xc8] sm:$0xff]
    %v520 = vld [vmem:[%s1 + $0xd0] sm:$0xff]
    %v521 = vld [vmem:[%s1 + $0xd8] sm:$0xff]
    %v522 = vld [vmem:[%s1 + $0xe0] sm:$0xff]
    %v523 = vld [vmem:[%s1 + $0xe8] sm:$0xff]
    %v524 = vld [vmem:[%s1 + $0xf0] sm:$0xff]
    %v525 = vld [vmem:[%s1 + $0xf8] sm:$0xff]
    %s526 = scalar_lea.vmem %s2, 17
    %v527 = vld [vmem:[%s526] ss:$8 sm:$0x3]
    %v529 = vlaneseq
    %v530 = vshrl.u32 %v529, 7
    %v531 = vsub.s32 0, %v530
    %v532 = vrot.slane %v527, %v531
    %v533 = vlaneseq
    %v534 = vshrl.u32 %v533, 7
    %v535 = vsub.s32 1, %v534
    %v536 = vrot.slane %v527, %v535
    %v543 = vunpack.c.l.b16 %v490
    %v544 = vunpack.c.l.b16 %v491
    %v545 = vunpack.c.l.b16 %v492
    %v546 = vunpack.c.l.b16 %v493
    %vm547 = vcmask 1041409
    %v548 = vsel %vm547, %v545, %v543
    %v549 = vsel %vm547, %v546, %v544
    %v550 = vpack.c.b16 %v548, %v548
    %v551 = vpack.c.b16 %v549, %v549
    %v586 = vunpack.c.l.b16 %v494
    %v587 = vunpack.c.h.b16 %v494
    %v588 = vunpack.c.l.b16 %v495
    %v589 = vunpack.c.h.b16 %v495
    %v590 = vunpack.c.l.b16 %v496
    %v591 = vunpack.c.h.b16 %v496
    %v592 = vunpack.c.l.b16 %v497
    %v593 = vunpack.c.h.b16 %v497
    %v594 = vunpack.c.l.b16 %v498
    %v595 = vunpack.c.h.b16 %v498
    %v596 = vunpack.c.l.b16 %v499
    %v597 = vunpack.c.h.b16 %v499
    %v598 = vunpack.c.l.b16 %v500
    %v599 = vunpack.c.h.b16 %v500
    %v600 = vunpack.c.l.b16 %v501
    %v601 = vunpack.c.h.b16 %v501
    %v602 = vunpack.c.l.b16 %v502
    %v603 = vunpack.c.h.b16 %v502
    %v604 = vunpack.c.l.b16 %v503
    %v605 = vunpack.c.h.b16 %v503
    %v606 = vunpack.c.l.b16 %v504
    %v607 = vunpack.c.h.b16 %v504
    %v608 = vunpack.c.l.b16 %v505
    %v609 = vunpack.c.h.b16 %v505
    %v610 = vunpack.c.l.b16 %v506
    %v611 = vunpack.c.h.b16 %v506
    %v612 = vunpack.c.l.b16 %v507
    %v613 = vunpack.c.h.b16 %v507
    %v614 = vunpack.c.l.b16 %v508
    %v615 = vunpack.c.h.b16 %v508
    %v616 = vunpack.c.l.b16 %v509
    %v617 = vunpack.c.h.b16 %v509
    %v618 = vunpack.c.l.b16 %v510
    %v619 = vunpack.c.h.b16 %v510
    %v620 = vunpack.c.l.b16 %v511
    %v621 = vunpack.c.h.b16 %v511
    %v622 = vunpack.c.l.b16 %v512
    %v623 = vunpack.c.h.b16 %v512
    %v624 = vunpack.c.l.b16 %v513
    %v625 = vunpack.c.h.b16 %v513
    %v626 = vunpack.c.l.b16 %v514
    %v627 = vunpack.c.h.b16 %v514
    %v628 = vunpack.c.l.b16 %v515
    %v629 = vunpack.c.h.b16 %v515
    %v630 = vunpack.c.l.b16 %v516
    %v631 = vunpack.c.h.b16 %v516
    %v632 = vunpack.c.l.b16 %v517
    %v633 = vunpack.c.h.b16 %v517
    %v634 = vunpack.c.l.b16 %v518
    %v635 = vunpack.c.h.b16 %v518
    %v636 = vunpack.c.l.b16 %v519
    %v637 = vunpack.c.h.b16 %v519
    %v638 = vunpack.c.l.b16 %v520
    %v639 = vunpack.c.h.b16 %v520
    %v640 = vunpack.c.l.b16 %v521
    %v641 = vunpack.c.h.b16 %v521
    %v642 = vunpack.c.l.b16 %v522
    %v643 = vunpack.c.h.b16 %v522
    %v644 = vunpack.c.l.b16 %v523
    %v645 = vunpack.c.h.b16 %v523
    %v646 = vunpack.c.l.b16 %v524
    %v647 = vunpack.c.h.b16 %v524
    %v648 = vunpack.c.l.b16 %v525
    %v649 = vunpack.c.h.b16 %v525
    %v650 = vpack.c.b16 %v588, %v586
    %v651 = vpack.c.b16 %v589, %v587
    %v652 = vpack.c.b16 %v592, %v590
    %v653 = vpack.c.b16 %v593, %v591
    %v654 = vpack.c.b16 %v596, %v594
    %v655 = vpack.c.b16 %v597, %v595
    %v656 = vpack.c.b16 %v600, %v598
    %v657 = vpack.c.b16 %v601, %v599
    %v658 = vpack.c.b16 %v604, %v602
    %v659 = vpack.c.b16 %v605, %v603
    %v660 = vpack.c.b16 %v608, %v606
    %v661 = vpack.c.b16 %v609, %v607
    %v662 = vpack.c.b16 %v612, %v610
    %v663 = vpack.c.b16 %v613, %v611
    %v664 = vpack.c.b16 %v616, %v614
    %v665 = vpack.c.b16 %v617, %v615
    %v666 = vpack.c.b16 %v620, %v618
    %v667 = vpack.c.b16 %v621, %v619
    %v668 = vpack.c.b16 %v624, %v622
    %v669 = vpack.c.b16 %v625, %v623
    %v670 = vpack.c.b16 %v628, %v626
    %v671 = vpack.c.b16 %v629, %v627
    %v672 = vpack.c.b16 %v632, %v630
    %v673 = vpack.c.b16 %v633, %v631
    %v674 = vpack.c.b16 %v636, %v634
    %v675 = vpack.c.b16 %v637, %v635
    %v676 = vpack.c.b16 %v640, %v638
    %v677 = vpack.c.b16 %v641, %v639
    %v678 = vpack.c.b16 %v644, %v642
    %v679 = vpack.c.b16 %v645, %v643
    %v680 = vpack.c.b16 %v648, %v646
    %v681 = vpack.c.b16 %v649, %v647
    %714 = vmatprep.subr.bf16.mxu0 %v651
    %715 = vmatpush1.bf16.msra.mxu0 %v650
    %716 = vmatprep.subr.bf16.mxu0 %v653
    %717 = vmatpush1.bf16.msra.mxu0 %v652
    %718 = vmatprep.subr.bf16.mxu0 %v655
    %719 = vmatpush1.bf16.msra.mxu0 %v654
    %720 = vmatprep.subr.bf16.mxu0 %v657
    %721 = vmatpush1.bf16.msra.mxu0 %v656
    %722 = vmatprep.subr.bf16.mxu0 %v659
    %723 = vmatpush1.bf16.msra.mxu0 %v658
    %724 = vmatprep.subr.bf16.mxu0 %v661
    %725 = vmatpush1.bf16.msra.mxu0 %v660
    %726 = vmatprep.subr.bf16.mxu0 %v663
    %727 = vmatpush1.bf16.msra.mxu0 %v662
    %728 = vmatprep.subr.bf16.mxu0 %v665
    %729 = vmatpush1.bf16.msra.mxu0 %v664
    %730 = vmatprep.subr.bf16.mxu0 %v667
    %731 = vmatpush1.bf16.msra.mxu0 %v666
    %732 = vmatprep.subr.bf16.mxu0 %v669
    %733 = vmatpush1.bf16.msra.mxu0 %v668
    %734 = vmatprep.subr.bf16.mxu0 %v671
    %735 = vmatpush1.bf16.msra.mxu0 %v670
    %736 = vmatprep.subr.bf16.mxu0 %v673
    %737 = vmatpush1.bf16.msra.mxu0 %v672
    %738 = vmatprep.subr.bf16.mxu0 %v675
    %739 = vmatpush1.bf16.msra.mxu0 %v674
    %740 = vmatprep.subr.bf16.mxu0 %v677
    %741 = vmatpush1.bf16.msra.mxu0 %v676
    %742 = vmatprep.subr.bf16.mxu0 %v679
    %743 = vmatpush1.bf16.msra.mxu0 %v678
    %744 = vmatprep.subr.bf16.mxu0 %v681
    %745 = vmatpush1.bf16.msra.mxu0 %v680
    %746 = vmatprep.mubr.bf16.mxu0 %v551
    %747 = vmatmul.mubr.bf16.gmra.mrb[0].mxu0 %v550
    %v748 = vpop.f32.mrb[0].mxu0
    %v749 = vadd.f32 %v532, %v748
    %v750 = vpop.f32.mrb[0].mxu0
    %v751 = vadd.f32 %v536, %v750
    %v752 = vpop.f32.mrb[0].mxu0
    %v753 = vpop.f32.mrb[0].mxu0
    %754 = vdwg.mxu0
    %v755 = vmax.f32 %v749, 0.0
    %v756 = vmax.f32 %v751, 0.0
    %s757 = scalar_lea.vmem %s2, 18
    %v758 = vld [vmem:[%s757] ss:$8 sm:$0x3]
    %v760 = vlaneseq
    %v761 = vshrl.u32 %v760, 7
    %v762 = vsub.s32 0, %v761
    %v763 = vrot.slane %v758, %v762
    %v764 = vlaneseq
    %v765 = vshrl.u32 %v764, 7
    %v766 = vsub.s32 1, %v765
    %v767 = vrot.slane %v758, %v766
    %v770 = vmul.f32 %v755, %v763
    %v771 = vmul.f32 %v756, %v767
    %vm772 = vcmask 1041408
    %v773 = vsel %vm772, %v770, 0.0
    %v774 = vsel %vm772, %v771, 0.0
    %v775 = vadd.f32 %v773, %v774
    %776 = vadd.xlane.f32.xlu0 %v775
    %v777 = vpop.xlane.xlu0 %776
    %s778 = sld [smem:[#allocation2 + $0x1]]
    %v779 = vstv %s778
    %v780 = vadd.f32 %v777, %v779
    %vm781 = vcmask 1024
    %782 = vst.msk [vmem:[%s5] sm:$0x3] %vm781, %v780
    // Predicated region
    $region26: #{confidence_forward.1} parent=1 // pred_check
      _
    $region27: #{confidence_forward.1} parent=1 // pred_check_branch
      %784 = sbr.rel (0) target = $region29
    $region28: #{confidence_forward.1} parent=1 // pred_region
      _
    $region29: #{confidence_forward.1} parent=1 // pred_fallthru
      _
    // Predicated region
    $region30: #{confidence_forward.1} parent=1 // pred_check
      _
    $region31: #{confidence_forward.1} parent=1 // pred_check_branch
      %786 = sbr.rel (0) target = $region33
    $region32: #{confidence_forward.1} parent=1 // pred_region
      _
    $region33: #{confidence_forward.1} parent=1 // pred_fallthru
      _
    %787 = vsyncpa [#allocation3], 1

</llo_original>
